<compile_context>
chip_gen: v5e
topology: v5e:2x2
jax: 0.10.0
libtpu: 0.0.40
codegen_flags: <defaults>
</compile_context>

<pallas_src>
import functools

import jax
import jax.numpy as jnp
from jax.experimental import pallas as pl
from jax.experimental.pallas import tpu as pltpu

CLAMP_MIN = 0.06
CLAMP_MAX = 0.11
BN_EPS = 1e-5


def _conv_bn_clamp_kernel(x_ref, w_ref, gb_ref, o_ref, *, p_valid):
    # x_ref:  (Cin, P)    f32  -- channels on sublanes, pixels on lanes
    # w_ref:  (Cout, Cin) f32
    # gb_ref: (Cout, 2)   f32  -- column 0 = gamma, column 1 = beta
    # o_ref:  (Cout, P)   f32
    x = x_ref[...]
    w = w_ref[...]

    # 1x1 conv == (Cout, Cin) @ (Cin, P) matmul on the MXU; lane-dense over P.
    y = jnp.dot(w, x, preferred_element_type=jnp.float32)         # (Cout, P)

    inv_p = 1.0 / float(p_valid)                                   # static constant

    # Single-pass batch stats over the pixel (lane) axis: two independent XLU
    # reductions, no masking (no padded lanes).
    s1 = jnp.sum(y, axis=-1, keepdims=True)                        # (Cout, 1)
    s2 = jnp.sum(y * y, axis=-1, keepdims=True)                    # (Cout, 1)
    mean = s1 * inv_p
    var = s2 * inv_p - mean * mean                                 # biased variance
    inv_std = jax.lax.rsqrt(var + BN_EPS)                          # EUP slot

    # Fold affine into per-channel scale/shift (scalar math on a (Cout,1) tile).
    gamma = gb_ref[:, 0:1]                                         # (Cout, 1)
    beta = gb_ref[:, 1:2]
    a = gamma * inv_std
    b = beta - mean * a
    yn = y * a + b                                                 # 2 full-width VPU ops

    # clamp_min then clamp_max.
    o_ref[...] = jnp.minimum(jnp.maximum(yn, CLAMP_MIN), CLAMP_MAX)


@jax.jit
def conv_bn_clamp(x_nchw, w_conv, gamma, beta):
    """x_nchw: (N, Cin, H, W); w_conv: (Cout, Cin, 1, 1); gamma/beta: (Cout,)."""
    n, cin, h, wd = x_nchw.shape
    cout = w_conv.shape[0]
    p = n * h * wd

    x_nchw = x_nchw.astype(jnp.float32)
    if n == 1:
        x2d = x_nchw.reshape(cin, p)                 # zero transposes for N == 1
    else:
        # TODO(synk): for N > 1 / large P, replace this HBM transpose with a
        # (pl.Squeezed(), Cin, H*W) grid over N ('arbitrary') using s1/s2 VMEM
        # accumulators and finalize-on-last-step normalization (tile_P >= 1024).
        x2d = jnp.transpose(x_nchw, (1, 0, 2, 3)).reshape(cin, p)

    w_mat = w_conv.reshape(cout, cin).astype(jnp.float32)          # (Cout, Cin)
    gb = jnp.stack([gamma.astype(jnp.float32),
                    beta.astype(jnp.float32)], axis=1)             # (Cout, 2)

    out2d = pl.pallas_call(
        functools.partial(_conv_bn_clamp_kernel, p_valid=p),
        out_shape=jax.ShapeDtypeStruct((cout, p), jnp.float32),
        in_specs=[
            pl.BlockSpec(memory_space=pltpu.MemorySpace.VMEM),
            pl.BlockSpec(memory_space=pltpu.MemorySpace.VMEM),
            pl.BlockSpec(memory_space=pltpu.MemorySpace.VMEM),
        ],
        out_specs=pl.BlockSpec(memory_space=pltpu.MemorySpace.VMEM),
    )(x2d, w_mat, gb)

    if n == 1:
        return out2d.reshape(1, cout, h, wd)                       # zero transposes for N == 1
    return jnp.transpose(out2d.reshape(cout, n, h, wd), (1, 0, 2, 3))


def reference(x_nchw, w_conv, gamma, beta):
    # Plain-JAX reference of the same semantics (training-mode BN, biased variance).
    n, cin, h, wd = x_nchw.shape
    cout = w_conv.shape[0]
    x_flat = jnp.transpose(x_nchw, (0, 2, 3, 1)).reshape(-1, cin)
    y = x_flat @ w_conv.reshape(cout, cin).T
    mean = jnp.mean(y, axis=0, keepdims=True)
    var = jnp.mean((y - mean) ** 2, axis=0, keepdims=True)
    yn = (y - mean) / jnp.sqrt(var + BN_EPS) * gamma.reshape(1, -1) + beta.reshape(1, -1)
    yn = jnp.clip(yn, CLAMP_MIN, CLAMP_MAX)
    return jnp.transpose(yn.reshape(n, h, wd, cout), (0, 3, 1, 2))


if __name__ == "__main__":
    key = jax.random.PRNGKey(0)
    k_x, k_w = jax.random.split(key)

    # Shapes consistent with the module: x1 = randn(1, 18, 10, 10)
    N, CIN, H, W = 1, 18, 10, 10
    COUT = 2

    x = jax.random.normal(k_x, (N, CIN, H, W), dtype=jnp.float32)
    # Conv2d(18, 2, 1, bias=False) weight: shape (2, 18, 1, 1)
    w_conv = jax.random.normal(k_w, (COUT, CIN, 1, 1), dtype=jnp.float32) * 0.1
    # BatchNorm2d affine parameters at PyTorch defaults: gamma=1, beta=0
    gamma = jnp.ones((COUT,), dtype=jnp.float32)
    beta = jnp.zeros((COUT,), dtype=jnp.float32)

    out = conv_bn_clamp(x, w_conv, gamma, beta)
    out = jax.block_until_ready(out)

    ref = reference(x, w_conv, gamma, beta)
    assert out.shape == (N, COUT, H, W)
    assert jnp.allclose(out, ref, atol=1e-5, rtol=1e-5)

    print("KERNEL_OK")
</pallas_src>

<mosaic_0001>
module attributes {stable_mosaic.version = 11 : i64} {
  func.func @_conv_bn_clamp_kernel(%arg0: memref<18x100xf32, #tpu.memory_space<vmem>>, %arg1: memref<2x18xf32, #tpu.memory_space<vmem>>, %arg2: memref<2x2xf32, #tpu.memory_space<vmem>>, %arg3: memref<2x100xf32, #tpu.memory_space<vmem>>) attributes {dimension_semantics = [], scalar_prefetch = 0 : i64, scratch_operands = 0 : i64, tpu.core_type = #tpu.core_type<tc>} {
    %c0 = arith.constant 0 : index
    %c0_0 = arith.constant 0 : index
    %0 = vector.load %arg0[%c0, %c0_0] : memref<18x100xf32, #tpu.memory_space<vmem>>, vector<18x100xf32>
    %c0_1 = arith.constant 0 : index
    %c0_2 = arith.constant 0 : index
    %1 = vector.load %arg1[%c0_1, %c0_2] : memref<2x18xf32, #tpu.memory_space<vmem>>, vector<2x18xf32>
    %cst = arith.constant dense<0.000000e+00> : vector<2x100xf32>
    %2 = tpu.matmul %1, %0, %cst {dimension_numbers = #tpu.dot_dimension_numbers<[1], [0], [0], [1], [0, 0, 1, 1], [], []>} : vector<2x18xf32>, vector<18x100xf32>, vector<2x100xf32> -> vector<2x100xf32>
    %cst_3 = arith.constant dense<0.000000e+00> : vector<2xf32>
    %3 = vector.multi_reduction <add>, %2, %cst_3 [1] : vector<2x100xf32> to vector<2xf32>
    %4 = vector.shape_cast %3 : vector<2xf32> to vector<2x1xf32>
    %5 = arith.mulf %2, %2 : vector<2x100xf32>
    %cst_4 = arith.constant dense<0.000000e+00> : vector<2xf32>
    %6 = vector.multi_reduction <add>, %5, %cst_4 [1] : vector<2x100xf32> to vector<2xf32>
    %7 = vector.shape_cast %6 : vector<2xf32> to vector<2x1xf32>
    %cst_5 = arith.constant 0.00999999977 : f32
    %8 = vector.broadcast %cst_5 : f32 to vector<2x1xf32>
    %9 = arith.mulf %4, %8 : vector<2x1xf32>
    %cst_6 = arith.constant 0.00999999977 : f32
    %10 = vector.broadcast %cst_6 : f32 to vector<2x1xf32>
    %11 = arith.mulf %7, %10 : vector<2x1xf32>
    %12 = arith.mulf %9, %9 : vector<2x1xf32>
    %13 = arith.subf %11, %12 : vector<2x1xf32>
    %cst_7 = arith.constant 9.99999974E-6 : f32
    %14 = vector.broadcast %cst_7 : f32 to vector<2x1xf32>
    %15 = arith.addf %13, %14 : vector<2x1xf32>
    %16 = math.rsqrt %15 : vector<2x1xf32>
    %c0_8 = arith.constant 0 : index
    %c0_9 = arith.constant 0 : index
    %17 = vector.load %arg2[%c0_8, %c0_9] : memref<2x2xf32, #tpu.memory_space<vmem>>, vector<2x1xf32>
    %c0_10 = arith.constant 0 : index
    %c1 = arith.constant 1 : index
    %18 = vector.load %arg2[%c0_10, %c1] : memref<2x2xf32, #tpu.memory_space<vmem>>, vector<2x1xf32>
    %19 = arith.mulf %17, %16 : vector<2x1xf32>
    %20 = arith.mulf %9, %19 : vector<2x1xf32>
    %21 = arith.subf %18, %20 : vector<2x1xf32>
    %22 = vector.broadcast %19 : vector<2x1xf32> to vector<2x100xf32>
    %23 = arith.mulf %2, %22 : vector<2x100xf32>
    %24 = vector.broadcast %21 : vector<2x1xf32> to vector<2x100xf32>
    %25 = arith.addf %23, %24 : vector<2x100xf32>
    %cst_11 = arith.constant 6.000000e-02 : f32
    %26 = vector.broadcast %cst_11 : f32 to vector<2x100xf32>
    %27 = arith.maximumf %25, %26 : vector<2x100xf32>
    %cst_12 = arith.constant 1.100000e-01 : f32
    %28 = vector.broadcast %cst_12 : f32 to vector<2x100xf32>
    %29 = arith.minimumf %27, %28 : vector<2x100xf32>
    %c0_13 = arith.constant 0 : index
    %c0_14 = arith.constant 0 : index
    %30 = vector.load %arg3[%c0_13, %c0_14] : memref<2x100xf32, #tpu.memory_space<vmem>>, vector<2x100xf32>
    tpu.vector_store %arg3[%c0_13, %c0_14], %29 {strides = array<i32>} : memref<2x100xf32, #tpu.memory_space<vmem>>, vector<2x100xf32>,
    return
  }
}

</mosaic_0001>

<llo_original>
// kernel: conv_bn_clamp.1
$region0: #{conv_bn_clamp.1}
  #allocation0 [shape = 'u32[]', space=smem, size = 0x4, offset = 0x4, fixed_abs, tag = 'smem constant byte address 0x4 - core index']
  #allocation1 [shape = 'u32[72,128]{1,0:T(1,128)}', space=vmem, size = 0x9000, scoped, tag = 'internal scratch']
  %s0 = inlined_call_operand.vmem [shape: f32[18,100], index: 0, kind: input, shape index: {}]
  %s1 = inlined_call_operand.vmem [shape: f32[2,18], index: 1, kind: input, shape index: {}]
  %s2 = inlined_call_operand.vmem [shape: f32[2,2], index: 2, kind: input, shape index: {}]
  %s3 = inlined_call_operand.vmem [shape: f32[2,100], index: 3, kind: output, shape index: {}]
  %s4 = sld [smem:[#allocation0]]
  $region22: #{conv_bn_clamp.1} parent=0
    _
  %s6 = ssub.s32 1, %s4
  %s7 = scalar_select 0, %s6, %s4
  // Predicated region
  $region2: #{conv_bn_clamp.1} parent=0 // pred_check
    _
  $region3: #{conv_bn_clamp.1} parent=0 // pred_check_branch
    %9 = sbr.rel (0) target = $region5
  $region4: #{conv_bn_clamp.1} parent=0 // pred_region
    _
  $region5: #{conv_bn_clamp.1} parent=0 // pred_fallthru
    _
  // Predicated region
  $region6: #{conv_bn_clamp.1} parent=0 // pred_check
    _
  $region7: #{conv_bn_clamp.1} parent=0 // pred_check_branch
    %11 = sbr.rel (0) target = $region9
  $region8: #{conv_bn_clamp.1} parent=0 // pred_region
    _
  $region9: #{conv_bn_clamp.1} parent=0 // pred_fallthru
    _
  // Predicated region
  $region10: #{conv_bn_clamp.1} parent=0 // pred_check
    _
  $region11: #{conv_bn_clamp.1} parent=0 // pred_check_branch
    %13 = sbr.rel (0) target = $region13
  $region12: #{conv_bn_clamp.1} parent=0 // pred_region
    _
  $region13: #{conv_bn_clamp.1} parent=0 // pred_fallthru
    _
  %v14 = vld [vmem:[%s0] sm:$0xff]
  %v15 = vld [vmem:[%s0 + $0x8] sm:$0xff]
  %v16 = vld [vmem:[%s0 + $0x10] sm:$0x3]
  %v17 = vld [vmem:[%s1] sm:$0x3]
  %vm18 = vcmask 146432
  %v20 = vsel %vm18, %v17, 0
  %vm22 = vcmask 1041408
  %v24 = vsel %vm22, %v16, 0
  %26 = vmatpush.msra.mxu0 0.0
  %27 = vmatpush.msra.mxu0 0.0
  %28 = vmatpush.msra.mxu0 0.0
  %29 = vmatpush.msra.mxu0 0.0
  %30 = vmatpush.msra.mxu0 0.0
  %31 = vmatpush.msra.mxu0 0.0
  %32 = vmatpush.msra.mxu0 0.0
  %33 = vmatpush.msra.mxu0 0.0
  %34 = vmatpush.msra.mxu0 0.0
  %35 = vmatpush.msra.mxu0 0.0
  %36 = vmatpush.msra.mxu0 0.0
  %37 = vmatpush.msra.mxu0 0.0
  %38 = vmatpush.msra.mxu0 0.0
  %39 = vmatpush.msra.mxu0 %v24
  %40 = vmatpush.msra.mxu0 %v15
  %41 = vmatpush.msra.mxu0 %v14
  %42 = vmatmul.f32.gmra.mxu0 %v20
  %v43 = vpop.f32.mrf.mxu0
  %v44 = vadd.f32 0.0, %v43
  %45 = vdwg.mxu0
  %vm46 = vcmask 812032
  %v47 = vsel %vm46, %v44, 0.0
  %48 = vadd.xlane.f32.xlu0 %v47
  %v49 = vpop.xlane.xlu0 %48
  %v50 = vmul.f32 %v44, %v44
  %v51 = vsel %vm46, %v50, 0.0
  %52 = vadd.xlane.f32.xlu0 %v51
  %v53 = vpop.xlane.xlu0 %52
  %v54 = vmul.f32 %v49, 0.01
  %v55 = vmul.f32 %v53, 0.01
  %v56 = vmul.f32 %v54, %v54
  %v57 = vsub.f32 %v55, %v56
  %v58 = vadd.f32 %v57, 1e-05
  %v59 = vrsqrt.pop %v58
  %v60 = vmul.f32 %v59, %v58
  %v61 = vmul.f32 %v60, %v59
  %v62 = vmul.f32 0.5, %v61
  %v63 = vsub.f32 1.5, %v62
  %v64 = vmul.f32 %v59, %v63
  %vm65 = vweird.f32 %v58
  %vm66 = vweird.f32 %v59
  %vm67 = vmor %vm65, %vm66
  %v68 = vsel %vm67, %v59, %v64
  %v69 = vld [vmem:[%s2] sm:$0x3]
  %v70 = vmul.f32 %v69, %v68
  %v71 = vmul.f32 %v54, %v70
  %73 = vrot.lane.b32.xlu0 %v71, 1
  %v74 = vpop.permute.xlu0 %73
  %v76 = vsub.f32 %v69, %v74
  %78 = vset.pattern.permute.xlu0 0
  %79 = vperm.xlu0 %78, %v70
  %v80 = vpop.permute.xlu0 %79
  %v82 = vmul.f32 %v44, %v80
  %84 = vset.pattern.permute.xlu0 1
  %85 = vperm.xlu0 %84, %v76
  %v86 = vpop.permute.xlu0 %85
  %v88 = vadd.f32 %v82, %v86
  %v89 = vmax.f32 %v88, 0.06
  %v90 = vmin.f32 %v89, 0.11
  %91 = vst.msk [vmem:[%s3] sm:$0x3] %vm46, %v90
  // Predicated region
  $region14: #{conv_bn_clamp.1} parent=0 // pred_check
    _
  $region15: #{conv_bn_clamp.1} parent=0 // pred_check_branch
    %93 = sbr.rel (0) target = $region17
  $region16: #{conv_bn_clamp.1} parent=0 // pred_region
    _
  $region17: #{conv_bn_clamp.1} parent=0 // pred_fallthru
    _
  // Predicated region
  $region18: #{conv_bn_clamp.1} parent=0 // pred_check
    _
  $region19: #{conv_bn_clamp.1} parent=0 // pred_check_branch
    %95 = sbr.rel (0) target = $region21
  $region20: #{conv_bn_clamp.1} parent=0 // pred_region
    _
  $region21: #{conv_bn_clamp.1} parent=0 // pred_fallthru
    _

</llo_original>
